<compile_context>
chip_gen: v7x
topology: tpu7x:2x2x1
jax: 0.10.0
libtpu: 0.0.40
codegen_flags: <defaults>
</compile_context>

<pallas_src>
import numpy as np
import jax
import jax.numpy as jnp
from jax.experimental import pallas as pl
from jax.experimental.pallas import tpu as pltpu


def _round_up(x, m):
    return (x + m - 1) // m * m


def resnet_block_forward(x, params):
    # x: (N, C, L) float32, PyTorch NCL layout
    N, C, L = x.shape
    Lo = (L - 2) // 2 + 1          # pooled length: MaxPool1d(3, 2) after pad (0,1)
    Lc = Lo + 1                    # per-sample chunk length (one always-zero column)
    Lt = 2 * Lo + 2                # padded sequence length for even/odd split
    Cp = _round_up(C, 8)
    NLc = N * Lc
    NLp = _round_up(NLc, 128)

    f32, bf16 = jnp.float32, jnp.bfloat16
    eps = 1e-5
    inv_cnt = 1.0 / float(N * Lo)

    # ---------------- host-side layout prep (tiny, single pass) ----------------
    xp = jnp.pad(x.astype(f32), ((0, 0), (0, 0), (0, Lt - L)))   # zeros: torch pad + align
    even = xp[:, :, 0::2]                                        # (N, C, Lc): positions 2j
    odd = xp[:, :, 1::2]                                         # (N, C, Lc): positions 2j+1

    def to_slab(a):                                              # (N,C,Lc) -> (Cp, NLp)
        a = a.transpose(1, 0, 2).reshape(C, NLc)
        return jnp.pad(a, ((0, Cp - C), (0, NLp - NLc)))

    even_s, odd_s = to_slab(even), to_slab(odd)

    def wcat(w):                                                 # (C,C,3) -> (Cp, 3*Cp) bf16
        taps = [jnp.pad(w[:, :, k], ((0, Cp - C), (0, Cp - C))) for k in range(3)]
        return jnp.concatenate(taps, axis=1).astype(bf16)

    w1c, w2c = wcat(params["w1"]), wcat(params["w2"])

    def colp(v):
        return jnp.pad(v.astype(f32), (0, Cp - C)).reshape(Cp, 1)

    # packed per-channel params: [g1, be1, b1, g2, be2, b2, 0, 0]
    pack = jnp.concatenate(
        [colp(params["g1"]), colp(params["be1"]), colp(params["b1"]),
         colp(params["g2"]), colp(params["be2"]), colp(params["b2"]),
         jnp.zeros((Cp, 2), f32)], axis=1)

    # validity mask over the flat lane axis (1 = real (n, l<Lo) column)
    t_idx = np.arange(NLp)
    mask_np = ((t_idx < NLc) & (t_idx % Lc < Lo)).astype(np.float32)
    mask_in = jnp.asarray(mask_np).reshape(1, NLp)

    # --------------------------------- kernel ----------------------------------
    def kernel(even_ref, odd_ref, mask_ref, w1_ref, w2_ref, pk_ref, out_ref):
        m = mask_ref[...]                                        # (1, NLp)

        def nxt(a):                                              # a[t+1] (wraps into zero pads)
            return pltpu.roll(a, NLp - 1, axis=1)

        def prv(a):                                              # a[t-1] (wraps into zero pads)
            return pltpu.roll(a, 1, axis=1)

        # --- ConstantPad1d((0,1),0) + MaxPool1d(k=3, s=2): VPU max + one roll ---
        ev = even_ref[...]
        od = odd_ref[...]
        p = jnp.maximum(jnp.maximum(ev, od), nxt(ev)) * m        # shortcut, zero on pads

        def bn_relu(h, gamma, beta):
            # h is zero on all invalid lanes; stats over the N*Lo real columns.
            mean = jnp.sum(h, axis=1, keepdims=True) * inv_cnt
            c = (h - mean) * m                                   # centered, pads re-zeroed
            var = jnp.sum(c * c, axis=1, keepdims=True) * inv_cnt
            scale = gamma * jax.lax.rsqrt(var + eps)
            return jnp.maximum(c * scale + beta, 0.0) * m

        def conv3(h, w_ref, bias):
            # Conv1d(C, C, k=3, pad=1) as one fused MXU matmul, K = 3*Cp.
            # Zero columns between samples act as the conv's zero padding.
            h_cat = jnp.concatenate([prv(h), h, nxt(h)], axis=0).astype(bf16)
            y = jnp.dot(w_ref[...], h_cat, preferred_element_type=jnp.float32)
            return (y + bias) * m

        h = bn_relu(p, pk_ref[:, 0:1], pk_ref[:, 1:2])
        h = conv3(h, w1_ref, pk_ref[:, 2:3])
        h = bn_relu(h, pk_ref[:, 3:4], pk_ref[:, 4:5])
        h = conv3(h, w2_ref, pk_ref[:, 5:6])

        out_ref[...] = h + p                                     # residual add

    vmem = pl.BlockSpec(memory_space=pltpu.MemorySpace.VMEM)
    out2 = pl.pallas_call(
        kernel,
        out_shape=jax.ShapeDtypeStruct((Cp, NLp), f32),
        in_specs=[vmem] * 6,
        out_specs=vmem,
        compiler_params=pltpu.CompilerParams(vmem_limit_bytes=32 * 1024 * 1024),
    )(even_s, odd_s, mask_in, w1c, w2c, pack)

    # strip channel/lane padding and the per-sample zero column; back to (N, C, Lo)
    return out2[:C, :NLc].reshape(C, N, Lc)[:, :, :Lo].transpose(1, 0, 2)


def resnet_block_reference(x, params):
    # plain-JAX reference (same semantics as the PyTorch module in train mode)
    N, C, L = x.shape
    xp = jnp.pad(x, ((0, 0), (0, 0), (0, 1)))
    Lo = (xp.shape[-1] - 3) // 2 + 1
    sc = jnp.stack([xp[:, :, 2 * l:2 * l + 3].max(axis=-1) for l in range(Lo)],
                   axis=-1)

    def bn(h, g, b):
        m = h.mean(axis=(0, 2), keepdims=True)
        v = ((h - m) ** 2).mean(axis=(0, 2), keepdims=True)
        return (h - m) / jnp.sqrt(v + 1e-5) * g.reshape(1, -1, 1) + b.reshape(1, -1, 1)

    def conv(h, w, b):
        y = jax.lax.conv_general_dilated(h, w, window_strides=(1,),
                                         padding=((1, 1),),
                                         dimension_numbers=("NCH", "OIH", "NCH"))
        return y + b.reshape(1, -1, 1)

    h = jax.nn.relu(bn(sc, params["g1"], params["be1"]))
    h = conv(h, params["w1"], params["b1"])
    h = jax.nn.relu(bn(h, params["g2"], params["be2"]))
    h = conv(h, params["w2"], params["b2"])
    return h + sc


if __name__ == "__main__":
    N, C, L = 2, 16, 32   # batch, channel_size, sequence length
    key = jax.random.PRNGKey(0)
    ks = jax.random.split(key, 9)
    x = jax.random.normal(ks[0], (N, C, L), jnp.float32)
    params = {
        "w1": 0.2 * jax.random.normal(ks[1], (C, C, 3), jnp.float32),
        "b1": 0.1 * jax.random.normal(ks[2], (C,), jnp.float32),
        "w2": 0.2 * jax.random.normal(ks[3], (C, C, 3), jnp.float32),
        "b2": 0.1 * jax.random.normal(ks[4], (C,), jnp.float32),
        "g1": 1.0 + 0.1 * jax.random.normal(ks[5], (C,), jnp.float32),
        "be1": 0.1 * jax.random.normal(ks[6], (C,), jnp.float32),
        "g2": 1.0 + 0.1 * jax.random.normal(ks[7], (C,), jnp.float32),
        "be2": 0.1 * jax.random.normal(ks[8], (C,), jnp.float32),
    }

    y = jax.block_until_ready(jax.jit(resnet_block_forward)(x, params))
    y_ref = jax.block_until_ready(resnet_block_reference(x, params))
    # bf16 MXU path for the convs -> slightly looser tolerance than pure f32
    np.testing.assert_allclose(np.asarray(y), np.asarray(y_ref), rtol=3e-2, atol=3e-2)
    print("KERNEL_OK")
</pallas_src>

<mosaic_0001>
module attributes {stable_mosaic.version = 11 : i64} {
  func.func @kernel(%arg0: memref<16x128xf32, #tpu.memory_space<vmem>>, %arg1: memref<16x128xf32, #tpu.memory_space<vmem>>, %arg2: memref<1x128xf32, #tpu.memory_space<vmem>>, %arg3: memref<16x48xbf16, #tpu.memory_space<vmem>>, %arg4: memref<16x48xbf16, #tpu.memory_space<vmem>>, %arg5: memref<16x8xf32, #tpu.memory_space<vmem>>, %arg6: memref<16x128xf32, #tpu.memory_space<vmem>>) attributes {dimension_semantics = [], scalar_prefetch = 0 : i64, scratch_operands = 0 : i64, tpu.core_type = #tpu.core_type<tc>} {
    %c0 = arith.constant 0 : index
    %c0_0 = arith.constant 0 : index
    %0 = vector.load %arg2[%c0, %c0_0] : memref<1x128xf32, #tpu.memory_space<vmem>>, vector<1x128xf32>
    %c0_1 = arith.constant 0 : index
    %c0_2 = arith.constant 0 : index
    %1 = vector.load %arg0[%c0_1, %c0_2] : memref<16x128xf32, #tpu.memory_space<vmem>>, vector<16x128xf32>
    %c0_3 = arith.constant 0 : index
    %c0_4 = arith.constant 0 : index
    %2 = vector.load %arg1[%c0_3, %c0_4] : memref<16x128xf32, #tpu.memory_space<vmem>>, vector<16x128xf32>
    %3 = arith.maximumf %1, %2 : vector<16x128xf32>
    %c127_i32 = arith.constant 127 : i32
    %4 = tpu.dynamic_rotate %1 by %c127_i32 dim 1 : vector<16x128xf32>, i32 -> vector<16x128xf32>
    %5 = arith.maximumf %3, %4 : vector<16x128xf32>
    %6 = vector.broadcast %0 : vector<1x128xf32> to vector<16x128xf32>
    %7 = arith.mulf %5, %6 : vector<16x128xf32>
    %c0_5 = arith.constant 0 : index
    %c0_6 = arith.constant 0 : index
    %8 = vector.load %arg5[%c0_5, %c0_6] : memref<16x8xf32, #tpu.memory_space<vmem>>, vector<16x1xf32>
    %c0_7 = arith.constant 0 : index
    %c1 = arith.constant 1 : index
    %9 = vector.load %arg5[%c0_7, %c1] : memref<16x8xf32, #tpu.memory_space<vmem>>, vector<16x1xf32>
    %cst = arith.constant dense<0.000000e+00> : vector<16xf32>
    %10 = vector.multi_reduction <add>, %7, %cst [1] : vector<16x128xf32> to vector<16xf32>
    %11 = vector.shape_cast %10 : vector<16xf32> to vector<16x1xf32>
    %cst_8 = arith.constant 3.125000e-02 : f32
    %12 = vector.broadcast %cst_8 : f32 to vector<16x1xf32>
    %13 = arith.mulf %11, %12 : vector<16x1xf32>
    %14 = vector.broadcast %13 : vector<16x1xf32> to vector<16x128xf32>
    %15 = arith.subf %7, %14 : vector<16x128xf32>
    %16 = vector.broadcast %0 : vector<1x128xf32> to vector<16x128xf32>
    %17 = arith.mulf %15, %16 : vector<16x128xf32>
    %18 = arith.mulf %17, %17 : vector<16x128xf32>
    %cst_9 = arith.constant dense<0.000000e+00> : vector<16xf32>
    %19 = vector.multi_reduction <add>, %18, %cst_9 [1] : vector<16x128xf32> to vector<16xf32>
    %20 = vector.shape_cast %19 : vector<16xf32> to vector<16x1xf32>
    %cst_10 = arith.constant 3.125000e-02 : f32
    %21 = vector.broadcast %cst_10 : f32 to vector<16x1xf32>
    %22 = arith.mulf %20, %21 : vector<16x1xf32>
    %cst_11 = arith.constant 9.99999974E-6 : f32
    %23 = vector.broadcast %cst_11 : f32 to vector<16x1xf32>
    %24 = arith.addf %22, %23 : vector<16x1xf32>
    %25 = math.rsqrt %24 : vector<16x1xf32>
    %26 = arith.mulf %8, %25 : vector<16x1xf32>
    %27 = vector.broadcast %26 : vector<16x1xf32> to vector<16x128xf32>
    %28 = arith.mulf %17, %27 : vector<16x128xf32>
    %29 = vector.broadcast %9 : vector<16x1xf32> to vector<16x128xf32>
    %30 = arith.addf %28, %29 : vector<16x128xf32>
    %cst_12 = arith.constant 0.000000e+00 : f32
    %31 = vector.broadcast %cst_12 : f32 to vector<16x128xf32>
    %32 = arith.maximumf %30, %31 : vector<16x128xf32>
    %33 = vector.broadcast %0 : vector<1x128xf32> to vector<16x128xf32>
    %34 = arith.mulf %32, %33 : vector<16x128xf32>
    %c0_13 = arith.constant 0 : index
    %c2 = arith.constant 2 : index
    %35 = vector.load %arg5[%c0_13, %c2] : memref<16x8xf32, #tpu.memory_space<vmem>>, vector<16x1xf32>
    %c1_i32 = arith.constant 1 : i32
    %36 = tpu.dynamic_rotate %34 by %c1_i32 dim 1 : vector<16x128xf32>, i32 -> vector<16x128xf32>
    %c127_i32_14 = arith.constant 127 : i32
    %37 = tpu.dynamic_rotate %34 by %c127_i32_14 dim 1 : vector<16x128xf32>, i32 -> vector<16x128xf32>
    %38 = tpu.concatenate %36, %34, %37 in 0 : vector<16x128xf32>, vector<16x128xf32>, vector<16x128xf32> -> vector<48x128xf32>
    %39 = arith.truncf %38 : vector<48x128xf32> to vector<48x128xbf16>
    %c0_15 = arith.constant 0 : index
    %c0_16 = arith.constant 0 : index
    %40 = vector.load %arg3[%c0_15, %c0_16] : memref<16x48xbf16, #tpu.memory_space<vmem>>, vector<16x48xbf16>
    %cst_17 = arith.constant dense<0.000000e+00> : vector<16x128xf32>
    %41 = tpu.matmul %40, %39, %cst_17 {dimension_numbers = #tpu.dot_dimension_numbers<[1], [0], [0], [1], [0, 0, 1, 1], [], []>} : vector<16x48xbf16>, vector<48x128xbf16>, vector<16x128xf32> -> vector<16x128xf32>
    %42 = vector.broadcast %35 : vector<16x1xf32> to vector<16x128xf32>
    %43 = arith.addf %41, %42 : vector<16x128xf32>
    %44 = vector.broadcast %0 : vector<1x128xf32> to vector<16x128xf32>
    %45 = arith.mulf %43, %44 : vector<16x128xf32>
    %c0_18 = arith.constant 0 : index
    %c3 = arith.constant 3 : index
    %46 = vector.load %arg5[%c0_18, %c3] : memref<16x8xf32, #tpu.memory_space<vmem>>, vector<16x1xf32>
    %c0_19 = arith.constant 0 : index
    %c4 = arith.constant 4 : index
    %47 = vector.load %arg5[%c0_19, %c4] : memref<16x8xf32, #tpu.memory_space<vmem>>, vector<16x1xf32>
    %cst_20 = arith.constant dense<0.000000e+00> : vector<16xf32>
    %48 = vector.multi_reduction <add>, %45, %cst_20 [1] : vector<16x128xf32> to vector<16xf32>
    %49 = vector.shape_cast %48 : vector<16xf32> to vector<16x1xf32>
    %cst_21 = arith.constant 3.125000e-02 : f32
    %50 = vector.broadcast %cst_21 : f32 to vector<16x1xf32>
    %51 = arith.mulf %49, %50 : vector<16x1xf32>
    %52 = vector.broadcast %51 : vector<16x1xf32> to vector<16x128xf32>
    %53 = arith.subf %45, %52 : vector<16x128xf32>
    %54 = vector.broadcast %0 : vector<1x128xf32> to vector<16x128xf32>
    %55 = arith.mulf %53, %54 : vector<16x128xf32>
    %56 = arith.mulf %55, %55 : vector<16x128xf32>
    %cst_22 = arith.constant dense<0.000000e+00> : vector<16xf32>
    %57 = vector.multi_reduction <add>, %56, %cst_22 [1] : vector<16x128xf32> to vector<16xf32>
    %58 = vector.shape_cast %57 : vector<16xf32> to vector<16x1xf32>
    %cst_23 = arith.constant 3.125000e-02 : f32
    %59 = vector.broadcast %cst_23 : f32 to vector<16x1xf32>
    %60 = arith.mulf %58, %59 : vector<16x1xf32>
    %cst_24 = arith.constant 9.99999974E-6 : f32
    %61 = vector.broadcast %cst_24 : f32 to vector<16x1xf32>
    %62 = arith.addf %60, %61 : vector<16x1xf32>
    %63 = math.rsqrt %62 : vector<16x1xf32>
    %64 = arith.mulf %46, %63 : vector<16x1xf32>
    %65 = vector.broadcast %64 : vector<16x1xf32> to vector<16x128xf32>
    %66 = arith.mulf %55, %65 : vector<16x128xf32>
    %67 = vector.broadcast %47 : vector<16x1xf32> to vector<16x128xf32>
    %68 = arith.addf %66, %67 : vector<16x128xf32>
    %cst_25 = arith.constant 0.000000e+00 : f32
    %69 = vector.broadcast %cst_25 : f32 to vector<16x128xf32>
    %70 = arith.maximumf %68, %69 : vector<16x128xf32>
    %71 = vector.broadcast %0 : vector<1x128xf32> to vector<16x128xf32>
    %72 = arith.mulf %70, %71 : vector<16x128xf32>
    %c0_26 = arith.constant 0 : index
    %c5 = arith.constant 5 : index
    %73 = vector.load %arg5[%c0_26, %c5] : memref<16x8xf32, #tpu.memory_space<vmem>>, vector<16x1xf32>
    %c1_i32_27 = arith.constant 1 : i32
    %74 = tpu.dynamic_rotate %72 by %c1_i32_27 dim 1 : vector<16x128xf32>, i32 -> vector<16x128xf32>
    %c127_i32_28 = arith.constant 127 : i32
    %75 = tpu.dynamic_rotate %72 by %c127_i32_28 dim 1 : vector<16x128xf32>, i32 -> vector<16x128xf32>
    %76 = tpu.concatenate %74, %72, %75 in 0 : vector<16x128xf32>, vector<16x128xf32>, vector<16x128xf32> -> vector<48x128xf32>
    %77 = arith.truncf %76 : vector<48x128xf32> to vector<48x128xbf16>
    %c0_29 = arith.constant 0 : index
    %c0_30 = arith.constant 0 : index
    %78 = vector.load %arg4[%c0_29, %c0_30] : memref<16x48xbf16, #tpu.memory_space<vmem>>, vector<16x48xbf16>
    %cst_31 = arith.constant dense<0.000000e+00> : vector<16x128xf32>
    %79 = tpu.matmul %78, %77, %cst_31 {dimension_numbers = #tpu.dot_dimension_numbers<[1], [0], [0], [1], [0, 0, 1, 1], [], []>} : vector<16x48xbf16>, vector<48x128xbf16>, vector<16x128xf32> -> vector<16x128xf32>
    %80 = vector.broadcast %73 : vector<16x1xf32> to vector<16x128xf32>
    %81 = arith.addf %79, %80 : vector<16x128xf32>
    %82 = vector.broadcast %0 : vector<1x128xf32> to vector<16x128xf32>
    %83 = arith.mulf %81, %82 : vector<16x128xf32>
    %84 = arith.addf %83, %7 : vector<16x128xf32>
    %c0_32 = arith.constant 0 : index
    %c0_33 = arith.constant 0 : index
    %85 = vector.load %arg6[%c0_32, %c0_33] : memref<16x128xf32, #tpu.memory_space<vmem>>, vector<16x128xf32>
    tpu.vector_store %arg6[%c0_32, %c0_33], %84 {strides = array<i32>} : memref<16x128xf32, #tpu.memory_space<vmem>>, vector<16x128xf32>,
    return
  }
}

</mosaic_0001>

<llo_original>
// kernel: resnet_block_forward.1
$region0: #{resnet_block_forward.1}
  #allocation0 [shape = 'u32[]', space=smem, size = 0x4, offset = 0x4, fixed_abs, tag = 'smem constant byte address 0x4 - core index']
  #allocation1 [shape = 'u32[144,128]{1,0:T(1,128)}', space=vmem, size = 0x12000, scoped, tag = 'internal scratch']
  %s0 = inlined_call_operand.vmem [shape: f32[16,128], index: 0, kind: input, shape index: {}]
  %s1 = inlined_call_operand.vmem [shape: f32[16,128], index: 1, kind: input, shape index: {}]
  %s2 = inlined_call_operand.vmem [shape: f32[1,128], index: 2, kind: input, shape index: {}]
  %s3 = inlined_call_operand.vmem [shape: bf16[16,48], index: 3, kind: input, shape index: {}]
  %s4 = inlined_call_operand.vmem [shape: bf16[16,48], index: 4, kind: input, shape index: {}]
  %s5 = inlined_call_operand.vmem [shape: f32[16,8], index: 5, kind: input, shape index: {}]
  %s6 = inlined_call_operand.vmem [shape: f32[16,128], index: 6, kind: output, shape index: {}]
  %s7 = sld [smem:[#allocation0]]
  $region34: #{resnet_block_forward.1} parent=0
    _
  %s9 = ssub.s32 1, %s7
  %s10 = scalar_select 0, %s9, %s7
  // Predicated region
  $region2: #{resnet_block_forward.1} parent=0 // pred_check
    _
  $region3: #{resnet_block_forward.1} parent=0 // pred_check_branch
    %12 = sbr.rel (0) target = $region5
  $region4: #{resnet_block_forward.1} parent=0 // pred_region
    _
  $region5: #{resnet_block_forward.1} parent=0 // pred_fallthru
    _
  // Predicated region
  $region6: #{resnet_block_forward.1} parent=0 // pred_check
    _
  $region7: #{resnet_block_forward.1} parent=0 // pred_check_branch
    %14 = sbr.rel (0) target = $region9
  $region8: #{resnet_block_forward.1} parent=0 // pred_region
    _
  $region9: #{resnet_block_forward.1} parent=0 // pred_fallthru
    _
  // Predicated region
  $region10: #{resnet_block_forward.1} parent=0 // pred_check
    _
  $region11: #{resnet_block_forward.1} parent=0 // pred_check_branch
    %16 = sbr.rel (0) target = $region13
  $region12: #{resnet_block_forward.1} parent=0 // pred_region
    _
  $region13: #{resnet_block_forward.1} parent=0 // pred_fallthru
    _
  // Predicated region
  $region14: #{resnet_block_forward.1} parent=0 // pred_check
    _
  $region15: #{resnet_block_forward.1} parent=0 // pred_check_branch
    %18 = sbr.rel (0) target = $region17
  $region16: #{resnet_block_forward.1} parent=0 // pred_region
    _
  $region17: #{resnet_block_forward.1} parent=0 // pred_fallthru
    _
  // Predicated region
  $region18: #{resnet_block_forward.1} parent=0 // pred_check
    _
  $region19: #{resnet_block_forward.1} parent=0 // pred_check_branch
    %20 = sbr.rel (0) target = $region21
  $region20: #{resnet_block_forward.1} parent=0 // pred_region
    _
  $region21: #{resnet_block_forward.1} parent=0 // pred_fallthru
    _
  // Predicated region
  $region22: #{resnet_block_forward.1} parent=0 // pred_check
    _
  $region23: #{resnet_block_forward.1} parent=0 // pred_check_branch
    %22 = sbr.rel (0) target = $region25
  $region24: #{resnet_block_forward.1} parent=0 // pred_region
    _
  $region25: #{resnet_block_forward.1} parent=0 // pred_fallthru
    _
  %v24 = vld [vmem:[%s2] sm:$0x1]
  %v25 = vld [vmem:[%s0] sm:$0xff]
  %v26 = vld [vmem:[%s0 + $0x8] sm:$0xff]
  %v27 = vld [vmem:[%s1] sm:$0xff]
  %v28 = vld [vmem:[%s1 + $0x8] sm:$0xff]
  %v29 = vmax.f32 %v25, %v27
  %v30 = vmax.f32 %v26, %v28
  %31 = vrot.lane.b32.xlu0 %v25, 127
  %v32 = vpop.permute.xlu0 %31
  %33 = vrot.lane.b32.xlu0 %v26, 127
  %v34 = vpop.permute.xlu0 %33
  %v35 = vmax.f32 %v29, %v32
  %v36 = vmax.f32 %v30, %v34
  %v38 = vlaneseq
  %v39 = vshrl.u32 %v38, 7
  %v40 = vsub.s32 0, %v39
  %v41 = vrot.slane %v24, %v40
  %v43 = vmul.f32 %v35, %v41
  %v44 = vmul.f32 %v36, %v41
  %v45 = vld [vmem:[%s5] sm:$0xff]
  %v46 = vld [vmem:[%s5 + $0x8] sm:$0xff]
  %47 = vadd.xlane.f32.xlu0 %v43
  %v48 = vpop.xlane.xlu0 %47
  %49 = vadd.xlane.f32.xlu0 %v44
  %v50 = vpop.xlane.xlu0 %49
  %v51 = vmul.f32 %v48, 0.03125
  %v52 = vmul.f32 %v50, 0.03125
  %v53 = vsub.f32 %v43, %v51
  %v54 = vsub.f32 %v44, %v52
  %v55 = vmul.f32 %v53, %v41
  %v56 = vmul.f32 %v54, %v41
  %v57 = vmul.f32 %v55, %v55
  %v58 = vmul.f32 %v56, %v56
  %59 = vadd.xlane.f32.xlu0 %v57
  %v60 = vpop.xlane.xlu0 %59
  %61 = vadd.xlane.f32.xlu0 %v58
  %v62 = vpop.xlane.xlu0 %61
  %v63 = vmul.f32 %v60, 0.03125
  %v64 = vmul.f32 %v62, 0.03125
  %v65 = vadd.f32 %v63, 1e-05
  %v66 = vadd.f32 %v64, 1e-05
  %v67 = vrsqrt.pop %v65
  %v68 = vrsqrt.pop %v66
  %v69 = vmul.f32 %v45, %v67
  %v70 = vmul.f32 %v46, %v68
  %72 = vset.pattern.permute.xlu0 0
  %73 = vperm.xlu0 %72, %v69
  %v74 = vpop.permute.xlu0 %73
  %77 = vset.pattern.permute.xlu0 0
  %78 = vperm.xlu0 %77, %v70
  %v79 = vpop.permute.xlu0 %78
  %v81 = vmul.f32 %v55, %v74
  %v82 = vmul.f32 %v56, %v79
  %84 = vset.pattern.permute.xlu0 1
  %85 = vperm.xlu0 %84, %v45
  %v86 = vpop.permute.xlu0 %85
  %89 = vset.pattern.permute.xlu0 1
  %90 = vperm.xlu0 %89, %v46
  %v91 = vpop.permute.xlu0 %90
  %v93 = vadd.f32 %v81, %v86
  %v94 = vadd.f32 %v82, %v91
  %v95 = vmax.f32 %v93, 0.0
  %v96 = vmax.f32 %v94, 0.0
  %v97 = vmul.f32 %v95, %v41
  %v98 = vmul.f32 %v96, %v41
  %99 = vrot.lane.b32.xlu0 %v97, 1
  %v100 = vpop.permute.xlu0 %99
  %101 = vrot.lane.b32.xlu0 %v98, 1
  %v102 = vpop.permute.xlu0 %101
  %103 = vrot.lane.b32.xlu0 %v97, 127
  %v104 = vpop.permute.xlu0 %103
  %105 = vrot.lane.b32.xlu0 %v98, 127
  %v106 = vpop.permute.xlu0 %105
  %v107 = vpack.c.bf16 %v102, %v100
  %v108 = vpack.c.bf16 %v98, %v97
  %v109 = vpack.c.bf16 %v106, %v104
  %v110 = vld [vmem:[%s3] sm:$0xf]
  %v111 = vld [vmem:[%s3 + $0x4] sm:$0xf]
  %112 = vset.pattern.permute.xlu0 2
  %113 = vperm.xlu0 %112, %v45
  %v114 = vpop.permute.xlu0 %113
  %116 = vset.pattern.permute.xlu0 2
  %117 = vperm.xlu0 %116, %v46
  %v118 = vpop.permute.xlu0 %117
  %v122 = vunpack.c.l.b16 %v110
  %v123 = vunpack.c.l.b16 %v111
  %v124 = vpack.c.b16 %v123, %v122
  %vm125 = vcmask 392192
  %v127 = vsel %vm125, %v124, 0
  %129 = vmatprep.subr.bf16.mxu0 0
  %130 = vmatpush1.bf16.msra.mxu0 %v107
  %131 = vmatprep.subr.bf16.mxu0 0
  %132 = vmatpush1.bf16.msra.mxu0 %v108
  %133 = vmatprep.subr.bf16.mxu0 0
  %134 = vmatpush1.bf16.msra.mxu0 %v109
  %135 = vmatprep.subr.bf16.mxu0 0
  %136 = vmatpush1.bf16.msra.mxu0 0
  %137 = vmatprep.subr.bf16.mxu0 0
  %138 = vmatpush1.bf16.msra.mxu0 0
  %139 = vmatprep.subr.bf16.mxu0 0
  %140 = vmatpush1.bf16.msra.mxu0 0
  %141 = vmatprep.subr.bf16.mxu0 0
  %142 = vmatpush1.bf16.msra.mxu0 0
  %143 = vmatprep.subr.bf16.mxu0 0
  %144 = vmatpush1.bf16.msra.mxu0 0
  %145 = vmatprep.subr.bf16.mxu0 0
  %146 = vmatpush1.bf16.msra.mxu0 0
  %147 = vmatprep.subr.bf16.mxu0 0
  %148 = vmatpush1.bf16.msra.mxu0 0
  %149 = vmatprep.subr.bf16.mxu0 0
  %150 = vmatpush1.bf16.msra.mxu0 0
  %151 = vmatprep.subr.bf16.mxu0 0
  %152 = vmatpush1.bf16.msra.mxu0 0
  %153 = vmatprep.subr.bf16.mxu0 0
  %154 = vmatpush1.bf16.msra.mxu0 0
  %155 = vmatprep.subr.bf16.mxu0 0
  %156 = vmatpush1.bf16.msra.mxu0 0
  %157 = vmatprep.subr.bf16.mxu0 0
  %158 = vmatpush1.bf16.msra.mxu0 0
  %159 = vmatprep.subr.bf16.mxu0 0
  %160 = vmatpush1.bf16.msra.mxu0 0
  %161 = vmatprep.mubr.bf16.mxu0 0
  %162 = vmatmul.mubr.bf16.gmra.mrb[0].mxu0 %v127
  %v163 = vpop.f32.mrb[0].mxu0
  %v164 = vadd.f32 %v114, %v163
  %v165 = vpop.f32.mrb[0].mxu0
  %v166 = vpop.f32.mrb[0].mxu0
  %v167 = vadd.f32 %v118, %v166
  %v168 = vpop.f32.mrb[0].mxu0
  %169 = vdwg.mxu0
  %v170 = vmul.f32 %v164, %v41
  %v171 = vmul.f32 %v167, %v41
  %172 = vadd.xlane.f32.xlu0 %v170
  %v173 = vpop.xlane.xlu0 %172
  %174 = vadd.xlane.f32.xlu0 %v171
  %v175 = vpop.xlane.xlu0 %174
  %v176 = vmul.f32 %v173, 0.03125
  %v177 = vmul.f32 %v175, 0.03125
  %v178 = vsub.f32 %v170, %v176
  %v179 = vsub.f32 %v171, %v177
  %v180 = vmul.f32 %v178, %v41
  %v181 = vmul.f32 %v179, %v41
  %v182 = vmul.f32 %v180, %v180
  %v183 = vmul.f32 %v181, %v181
  %184 = vadd.xlane.f32.xlu0 %v182
  %v185 = vpop.xlane.xlu0 %184
  %186 = vadd.xlane.f32.xlu0 %v183
  %v187 = vpop.xlane.xlu0 %186
  %v188 = vmul.f32 %v185, 0.03125
  %v189 = vmul.f32 %v187, 0.03125
  %v190 = vadd.f32 %v188, 1e-05
  %v191 = vadd.f32 %v189, 1e-05
  %v192 = vrsqrt.pop %v190
  %v193 = vrsqrt.pop %v191
  %v194 = vmul.f32 %v45, %v192
  %v195 = vmul.f32 %v46, %v193
  %197 = vset.pattern.permute.xlu0 3
  %198 = vperm.xlu0 %197, %v194
  %v199 = vpop.permute.xlu0 %198
  %202 = vset.pattern.permute.xlu0 3
  %203 = vperm.xlu0 %202, %v195
  %v204 = vpop.permute.xlu0 %203
  %v206 = vmul.f32 %v180, %v199
  %v207 = vmul.f32 %v181, %v204
  %208 = vset.pattern.permute.xlu0 4
  %209 = vperm.xlu0 %208, %v45
  %v210 = vpop.permute.xlu0 %209
  %212 = vset.pattern.permute.xlu0 4
  %213 = vperm.xlu0 %212, %v46
  %v214 = vpop.permute.xlu0 %213
  %v216 = vadd.f32 %v206, %v210
  %v217 = vadd.f32 %v207, %v214
  %v218 = vmax.f32 %v216, 0.0
  %v219 = vmax.f32 %v217, 0.0
  %v220 = vmul.f32 %v218, %v41
  %v221 = vmul.f32 %v219, %v41
  %222 = vrot.lane.b32.xlu0 %v220, 1
  %v223 = vpop.permute.xlu0 %222
  %224 = vrot.lane.b32.xlu0 %v221, 1
  %v225 = vpop.permute.xlu0 %224
  %226 = vrot.lane.b32.xlu0 %v220, 127
  %v227 = vpop.permute.xlu0 %226
  %228 = vrot.lane.b32.xlu0 %v221, 127
  %v229 = vpop.permute.xlu0 %228
  %v230 = vpack.c.bf16 %v225, %v223
  %v231 = vpack.c.bf16 %v221, %v220
  %v232 = vpack.c.bf16 %v229, %v227
  %v233 = vld [vmem:[%s4] sm:$0xf]
  %v234 = vld [vmem:[%s4 + $0x4] sm:$0xf]
  %235 = vset.pattern.permute.xlu0 5
  %236 = vperm.xlu0 %235, %v45
  %v237 = vpop.permute.xlu0 %236
  %239 = vset.pattern.permute.xlu0 5
  %240 = vperm.xlu0 %239, %v46
  %v241 = vpop.permute.xlu0 %240
  %v245 = vunpack.c.l.b16 %v233
  %v246 = vunpack.c.l.b16 %v234
  %v247 = vpack.c.b16 %v246, %v245
  %v249 = vsel %vm125, %v247, 0
  %251 = vmatprep.subr.bf16.mxu0 0
  %252 = vmatpush1.bf16.msra.mxu0 %v230
  %253 = vmatprep.subr.bf16.mxu0 0
  %254 = vmatpush1.bf16.msra.mxu0 %v231
  %255 = vmatprep.subr.bf16.mxu0 0
  %256 = vmatpush1.bf16.msra.mxu0 %v232
  %257 = vmatprep.subr.bf16.mxu0 0
  %258 = vmatpush1.bf16.msra.mxu0 0
  %259 = vmatprep.subr.bf16.mxu0 0
  %260 = vmatpush1.bf16.msra.mxu0 0
  %261 = vmatprep.subr.bf16.mxu0 0
  %262 = vmatpush1.bf16.msra.mxu0 0
  %263 = vmatprep.subr.bf16.mxu0 0
  %264 = vmatpush1.bf16.msra.mxu0 0
  %265 = vmatprep.subr.bf16.mxu0 0
  %266 = vmatpush1.bf16.msra.mxu0 0
  %267 = vmatprep.subr.bf16.mxu0 0
  %268 = vmatpush1.bf16.msra.mxu0 0
  %269 = vmatprep.subr.bf16.mxu0 0
  %270 = vmatpush1.bf16.msra.mxu0 0
  %271 = vmatprep.subr.bf16.mxu0 0
  %272 = vmatpush1.bf16.msra.mxu0 0
  %273 = vmatprep.subr.bf16.mxu0 0
  %274 = vmatpush1.bf16.msra.mxu0 0
  %275 = vmatprep.subr.bf16.mxu0 0
  %276 = vmatpush1.bf16.msra.mxu0 0
  %277 = vmatprep.subr.bf16.mxu0 0
  %278 = vmatpush1.bf16.msra.mxu0 0
  %279 = vmatprep.subr.bf16.mxu0 0
  %280 = vmatpush1.bf16.msra.mxu0 0
  %281 = vmatprep.subr.bf16.mxu0 0
  %282 = vmatpush1.bf16.msra.mxu0 0
  %283 = vmatprep.mubr.bf16.mxu0 0
  %284 = vmatmul.mubr.bf16.gmra.mrb[0].mxu0 %v249
  %v285 = vpop.f32.mrb[0].mxu0
  %v286 = vadd.f32 %v237, %v285
  %v287 = vpop.f32.mrb[0].mxu0
  %v288 = vpop.f32.mrb[0].mxu0
  %v289 = vadd.f32 %v241, %v288
  %v290 = vpop.f32.mrb[0].mxu0
  %291 = vdwg.mxu0
  %v292 = vmul.f32 %v286, %v41
  %v293 = vmul.f32 %v289, %v41
  %v294 = vadd.f32 %v292, %v43
  %v295 = vadd.f32 %v293, %v44
  %296 = vst [vmem:[%s6] sm:$0xff] %v294
  %297 = vst [vmem:[%s6 + $0x8] sm:$0xff] %v295
  // Predicated region
  $region26: #{resnet_block_forward.1} parent=0 // pred_check
    _
  $region27: #{resnet_block_forward.1} parent=0 // pred_check_branch
    %299 = sbr.rel (0) target = $region29
  $region28: #{resnet_block_forward.1} parent=0 // pred_region
    _
  $region29: #{resnet_block_forward.1} parent=0 // pred_fallthru
    _
  // Predicated region
  $region30: #{resnet_block_forward.1} parent=0 // pred_check
    _
  $region31: #{resnet_block_forward.1} parent=0 // pred_check_branch
    %301 = sbr.rel (0) target = $region33
  $region32: #{resnet_block_forward.1} parent=0 // pred_region
    _
  $region33: #{resnet_block_forward.1} parent=0 // pred_fallthru
    _

</llo_original>
